<compile_context>
chip_gen: v6e
topology: v6e:2x2x1
jax: 0.10.0
libtpu: 0.0.40
codegen_flags: <defaults>
</compile_context>

<pallas_src>
import functools

import jax
import jax.numpy as jnp
from jax.experimental import pallas as pl
from jax.experimental.pallas import tpu as pltpu

NEG_SLOPE = 0.01  # F.leaky_relu default
LANE = 128
SUBLANE = 8
SMALL_BATCH_MAX = 512   # below this: no grid, whole operands as single VMEM blocks
MAX_BATCH_TILE = 2048   # HBM-roofline sweet spot; working set << 16 MiB scoped VMEM


def _round_up(x, m):
    return ((x + m - 1) // m) * m


def _fused_mlp_kernel(*refs, n_weights: int):
    """Fused bias-free MLP: o = W_{n-1}^T( ... leaky_relu(W_0^T x) ... ).

    refs = (x_ref, w_ref_0, ..., w_ref_{n-1}, o_ref); weights are stored
    pre-transposed as [in, out] so each layer is a plain x @ W on the MXU.
    Intermediates never leave vregs/VMEM.
    """
    x_ref = refs[0]
    w_refs = refs[1:1 + n_weights]
    o_ref = refs[1 + n_weights]

    h = x_ref[...]
    for i, w_ref in enumerate(w_refs):
        h = jnp.dot(h, w_ref[...], preferred_element_type=jnp.float32)
        if i < n_weights - 1:
            h = jnp.where(h > 0.0, h, NEG_SLOPE * h)
    o_ref[...] = h.astype(o_ref.dtype)


def _forward_small(x, weights, out_features):
    """No grid: whole arrays as single VMEM-resident blocks (tiny operands)."""
    b = x.shape[0]
    kern = functools.partial(_fused_mlp_kernel, n_weights=len(weights))
    return pl.pallas_call(
        kern,
        out_shape=jax.ShapeDtypeStruct((b, out_features), jnp.float32),
        in_specs=[pl.BlockSpec(memory_space=pltpu.MemorySpace.VMEM)]
        * (1 + len(weights)),
        out_specs=pl.BlockSpec(memory_space=pltpu.MemorySpace.VMEM),
    )(x, *weights)


def _forward_tiled(x, weights, out_features, batch_tile):
    """Batch tiled over a 'parallel' cdiv grid; weights stay resident."""
    b, fin = x.shape
    kern = functools.partial(_fused_mlp_kernel, n_weights=len(weights))

    in_specs = [pl.BlockSpec((batch_tile, fin), lambda i: (i, 0))]
    for w in weights:
        # Constant block index -> weight block stays resident across steps.
        in_specs.append(pl.BlockSpec(w.shape, lambda i: (0, 0)))

    return pl.pallas_call(
        kern,
        out_shape=jax.ShapeDtypeStruct((b, out_features), jnp.float32),
        grid=(pl.cdiv(b, batch_tile),),  # ragged last tile handled by Pallas
        in_specs=in_specs,
        out_specs=pl.BlockSpec((batch_tile, out_features), lambda i: (i, 0)),
        compiler_params=pltpu.CompilerParams(
            dimension_semantics=("parallel",)
        ),
    )(x, *weights)


def _choose_batch_tile(b):
    # Keep >= 2 grid steps so v7x's two TensorCores both get work; cap the tile
    # so double-buffered (x, out, weights) stays far below the v5e 16 MiB
    # default scoped-VMEM limit.
    half = _round_up(pl.cdiv(b, 2), SUBLANE)
    return min(MAX_BATCH_TILE, half)


@functools.partial(jax.jit, static_argnames=("out_features",))
def _ann_forward(x, weights, out_features):
    # Everything (dispatch choice, pallas_call, reshapes) in ONE executable.
    orig_shape = x.shape
    h = x.astype(jnp.float32)
    if h.ndim == 1:
        h = h[None, :]
    elif h.ndim > 2:
        h = h.reshape(-1, orig_shape[-1])

    b = h.shape[0]
    if b <= SMALL_BATCH_MAX:
        out = _forward_small(h, weights, out_features)
    else:
        out = _forward_tiled(h, weights, out_features, _choose_batch_tile(b))

    if len(orig_shape) == 1:
        return out[0]
    if len(orig_shape) > 2:
        return out.reshape(orig_shape[:-1] + (out_features,))
    return out


class ANNPallas:
    """JAX/Pallas port of the PyTorch ANN module (fused forward)."""

    def __init__(self, size, key):
        self.size = list(size)
        self.out_features = self.size[-1]
        self.d = sum(size[i] * size[i + 1] for i in range(len(size) - 1))
        n_layers = len(self.size) - 1

        weights = []
        for i in range(1, len(self.size)):
            key, sub = jax.random.split(key)
            fan_in, fan_out = self.size[i - 1], self.size[i]
            # nn.Linear default init: U(-1/sqrt(fan_in), 1/sqrt(fan_in))
            bound = float(fan_in) ** -0.5
            w_torch = jax.random.uniform(
                sub, (fan_out, fan_in), jnp.float32, minval=-bound, maxval=bound
            )
            w = jnp.transpose(w_torch)  # store pre-transposed: [in, out]

            # Zero-pad hidden widths to lane multiples (zeros propagate exactly
            # through bias-free matmul + leaky_relu). First layer's input dim
            # and last layer's output dim stay at their true sizes.
            is_last = (i == n_layers)
            in_pad = _round_up(fan_in, LANE) if i > 1 else fan_in
            out_pad = fan_out if is_last else _round_up(fan_out, LANE)
            w = jnp.pad(w, ((0, in_pad - fan_in), (0, out_pad - fan_out)))
            weights.append(w)
        self.weights = tuple(weights)

    def __call__(self, x):
        return _ann_forward(x, self.weights, self.out_features)

    def reference(self, x):
        """Plain-JAX reference for validation (same padded weights)."""
        h = x.astype(jnp.float32)
        for w in self.weights[:-1]:
            y = h @ w
            h = jnp.where(y > 0, y, NEG_SLOPE * y)
        return h @ self.weights[-1]


if __name__ == "__main__":
    key = jax.random.PRNGKey(0)
    size = [32, 64, 48, 16]          # ANN(size=[32, 64, 48, 16])

    key, kx, kw = jax.random.split(key, 3)
    model = ANNPallas(size, kw)

    # Small-batch path (single fused launch, no grid).
    x = jax.random.normal(kx, (8, size[0]), jnp.float32)
    out = jax.block_until_ready(model(x))
    ref = model.reference(x)
    assert out.shape == (8, size[-1])
    assert jnp.allclose(out, ref, atol=5e-4, rtol=5e-4), "mismatch vs reference (small)"

    # Large ragged batch: tiled path, >=2 'parallel' grid steps, partial last tile.
    key, kx2 = jax.random.split(key)
    xb = jax.random.normal(kx2, (4100, size[0]), jnp.float32)
    outb = jax.block_until_ready(model(xb))
    refb = model.reference(xb)
    assert outb.shape == (4100, size[-1])
    assert jnp.allclose(outb, refb, atol=5e-4, rtol=5e-4), "mismatch vs reference (tiled)"

    print("KERNEL_OK")
</pallas_src>

<mosaic_0001>
module attributes {stable_mosaic.version = 11 : i64} {
  func.func @_fused_mlp_kernel(%arg0: memref<8x32xf32, #tpu.memory_space<vmem>>, %arg1: memref<32x128xf32, #tpu.memory_space<vmem>>, %arg2: memref<128x128xf32, #tpu.memory_space<vmem>>, %arg3: memref<128x16xf32, #tpu.memory_space<vmem>>, %arg4: memref<8x16xf32, #tpu.memory_space<vmem>>) attributes {dimension_semantics = [], scalar_prefetch = 0 : i64, scratch_operands = 0 : i64, tpu.core_type = #tpu.core_type<tc>} {
    %c0 = arith.constant 0 : index
    %c0_0 = arith.constant 0 : index
    %0 = vector.load %arg0[%c0, %c0_0] : memref<8x32xf32, #tpu.memory_space<vmem>>, vector<8x32xf32>
    %c0_1 = arith.constant 0 : index
    %c0_2 = arith.constant 0 : index
    %1 = vector.load %arg1[%c0_1, %c0_2] : memref<32x128xf32, #tpu.memory_space<vmem>>, vector<32x128xf32>
    %cst = arith.constant dense<0.000000e+00> : vector<8x128xf32>
    %2 = tpu.matmul %0, %1, %cst {dimension_numbers = #tpu.dot_dimension_numbers<[1], [0], [0], [1], [0, 0, 1, 1], [], []>} : vector<8x32xf32>, vector<32x128xf32>, vector<8x128xf32> -> vector<8x128xf32>
    %cst_3 = arith.constant 0.000000e+00 : f32
    %3 = vector.broadcast %cst_3 : f32 to vector<8x128xf32>
    %4 = arith.cmpf ogt, %2, %3 : vector<8x128xf32>
    %cst_4 = arith.constant 0.00999999977 : f32
    %5 = vector.broadcast %cst_4 : f32 to vector<8x128xf32>
    %6 = arith.mulf %5, %2 : vector<8x128xf32>
    %7 = arith.select %4, %2, %6 : vector<8x128xi1>, vector<8x128xf32>
    %c0_5 = arith.constant 0 : index
    %c0_6 = arith.constant 0 : index
    %8 = vector.load %arg2[%c0_5, %c0_6] : memref<128x128xf32, #tpu.memory_space<vmem>>, vector<128x128xf32>
    %cst_7 = arith.constant dense<0.000000e+00> : vector<8x128xf32>
    %9 = tpu.matmul %7, %8, %cst_7 {dimension_numbers = #tpu.dot_dimension_numbers<[1], [0], [0], [1], [0, 0, 1, 1], [], []>} : vector<8x128xf32>, vector<128x128xf32>, vector<8x128xf32> -> vector<8x128xf32>
    %cst_8 = arith.constant 0.000000e+00 : f32
    %10 = vector.broadcast %cst_8 : f32 to vector<8x128xf32>
    %11 = arith.cmpf ogt, %9, %10 : vector<8x128xf32>
    %cst_9 = arith.constant 0.00999999977 : f32
    %12 = vector.broadcast %cst_9 : f32 to vector<8x128xf32>
    %13 = arith.mulf %12, %9 : vector<8x128xf32>
    %14 = arith.select %11, %9, %13 : vector<8x128xi1>, vector<8x128xf32>
    %c0_10 = arith.constant 0 : index
    %c0_11 = arith.constant 0 : index
    %15 = vector.load %arg3[%c0_10, %c0_11] : memref<128x16xf32, #tpu.memory_space<vmem>>, vector<128x16xf32>
    %cst_12 = arith.constant dense<0.000000e+00> : vector<8x16xf32>
    %16 = tpu.matmul %14, %15, %cst_12 {dimension_numbers = #tpu.dot_dimension_numbers<[1], [0], [0], [1], [0, 0, 1, 1], [], []>} : vector<8x128xf32>, vector<128x16xf32>, vector<8x16xf32> -> vector<8x16xf32>
    %c0_13 = arith.constant 0 : index
    %c0_14 = arith.constant 0 : index
    %17 = vector.load %arg4[%c0_13, %c0_14] : memref<8x16xf32, #tpu.memory_space<vmem>>, vector<8x16xf32>
    tpu.vector_store %arg4[%c0_13, %c0_14], %16 {strides = array<i32>} : memref<8x16xf32, #tpu.memory_space<vmem>>, vector<8x16xf32>,
    return
  }
}

</mosaic_0001>

<llo_original>
// kernel: _ann_forward.1
$region0: #{_ann_forward.1}
  #allocation0 [shape = 'u32[]', space=smem, size = 0x4, offset = 0x4, fixed_abs, tag = 'smem constant byte address 0x4 - core index']
  #allocation1 [shape = 'u32[144,128]{1,0:T(1,128)}', space=vmem, size = 0x12000, scoped, tag = 'internal scratch']
  %s0 = inlined_call_operand.vmem [shape: f32[8,32], index: 0, kind: input, shape index: {}]
  %s1 = inlined_call_operand.hbm [shape: f32[32,128], index: 1, kind: input, shape index: {}]
  %s2 = inlined_call_operand.vmem [shape: f32[128,128], index: 2, kind: input, shape index: {}]
  %s3 = inlined_call_operand.vmem [shape: f32[128,16], index: 3, kind: input, shape index: {}]
  %s4 = inlined_call_operand.hbm [shape: f32[8,16], index: 4, kind: output, shape index: {}]
  %s5 = sld [smem:[#allocation0]]
  $region30: #{_ann_forward.1} parent=0
    _
  %s7 = ssub.s32 1, %s5
  %s8 = scalar_select 0, %s7, %s5
  $region1: #{_ann_forward.1} parent=0
    #allocation2 [shape = 'u8[16384]{0}', space=vmem, size = 0x4000, scoped, tag = 'input window, operand 1, single buffered']
    #allocation3 [shape = 's32[1]{0}', space=sflag, size = 0x4, scoped, tag = 'scoped memory for _ann_forward.1']
    #allocation4 [shape = 's32[1]{0}', space=sflag, size = 0x4, scoped, tag = 'scoped memory for _ann_forward.1']
    #allocation5 [shape = 'u8[4096]{0}', space=vmem, size = 0x1000, scoped, tag = 'output window, operand 0, single buffered']
    %9 = vsyncpa [#allocation3], 0
    %10 = vsyncpa [#allocation4], 0
    // Predicated region
    $region2: #{_ann_forward.1} parent=1 // pred_check
      _
    $region3: #{_ann_forward.1} parent=1 // pred_check_branch
      %12 = sbr.rel (0) target = $region5
    $region4: #{_ann_forward.1} parent=1 // pred_region
      _
    $region5: #{_ann_forward.1} parent=1 // pred_fallthru
      _
    // Predicated region
    $region6: #{_ann_forward.1} parent=1 // pred_check
      _
    $region7: #{_ann_forward.1} parent=1 // pred_check_branch
      %14 = sbr.rel (0) target = $region9
    $region8: #{_ann_forward.1} parent=1 // pred_region
      %s16 = ssub.s32 512, 512
      %17 = vsyncadd [#allocation3], %s16
      %s18 = sshll.u32 [#allocation2], 4
      %s19 = int_to_ptr.vmem [resolvable:$true] %s18
      %24 = dma.hbm_to_vmem [thread:$0]  %s1, 512, %s19, [#allocation3], 128, 128, 8
    $region9: #{_ann_forward.1} parent=1 // pred_fallthru
      _
    // Predicated region
    $region10: #{_ann_forward.1} parent=1 // pred_check
      _
    $region11: #{_ann_forward.1} parent=1 // pred_check_branch
      %26 = sbr.rel (0) target = $region13
    $region12: #{_ann_forward.1} parent=1 // pred_region
      _
    $region13: #{_ann_forward.1} parent=1 // pred_fallthru
      _
    // Predicated region
    $region14: #{_ann_forward.1} parent=1 // pred_check
      _
    $region15: #{_ann_forward.1} parent=1 // pred_check_branch
      %28 = sbr.rel (0) target = $region17
    $region16: #{_ann_forward.1} parent=1 // pred_region
      _
    $region17: #{_ann_forward.1} parent=1 // pred_fallthru
      _
    // Predicated region
    $region18: #{_ann_forward.1} parent=1 // pred_check
      _
    $region19: #{_ann_forward.1} parent=1 // pred_check_branch
      %30 = sbr.rel (0) target = $region21
    $region20: #{_ann_forward.1} parent=1 // pred_region
      %31 = dma.done [#allocation3], 512
    $region21: #{_ann_forward.1} parent=1 // pred_fallthru
      _
    %v32 = vld [vmem:[%s0] sm:$0xff]
    %v33 = vld [vmem:[#allocation2] sm:$0xff]
    %v34 = vld [vmem:[#allocation2 + $0x8] sm:$0xff]
    %v35 = vld [vmem:[#allocation2 + $0x10] sm:$0xff]
    %v36 = vld [vmem:[#allocation2 + $0x18] sm:$0xff]
    %vm37 = vcmask 261120
    %v39 = vsel %vm37, %v32, 0
    %41 = vmatprep.subr.mxu0 0.0
    %42 = vmatpush1.msra.mxu0 0.0
    %43 = vmatprep.subr.mxu0 0.0
    %44 = vmatpush1.msra.mxu0 0.0
    %45 = vmatprep.subr.mxu0 0.0
    %46 = vmatpush1.msra.mxu0 0.0
    %47 = vmatprep.subr.mxu0 0.0
    %48 = vmatpush1.msra.mxu0 0.0
    %49 = vmatprep.subr.mxu0 0.0
    %50 = vmatpush1.msra.mxu0 0.0
    %51 = vmatprep.subr.mxu0 0.0
    %52 = vmatpush1.msra.mxu0 0.0
    %53 = vmatprep.subr.mxu0 0.0
    %54 = vmatpush1.msra.mxu0 0.0
    %55 = vmatprep.subr.mxu0 0.0
    %56 = vmatpush1.msra.mxu0 0.0
    %57 = vmatprep.subr.mxu0 0.0
    %58 = vmatpush1.msra.mxu0 0.0
    %59 = vmatprep.subr.mxu0 0.0
    %60 = vmatpush1.msra.mxu0 0.0
    %61 = vmatprep.subr.mxu0 0.0
    %62 = vmatpush1.msra.mxu0 0.0
    %63 = vmatprep.subr.mxu0 0.0
    %64 = vmatpush1.msra.mxu0 0.0
    %65 = vmatprep.subr.mxu0 0.0
    %66 = vmatpush1.msra.mxu0 %v36
    %67 = vmatprep.subr.mxu0 0.0
    %68 = vmatpush1.msra.mxu0 %v35
    %69 = vmatprep.subr.mxu0 0.0
    %70 = vmatpush1.msra.mxu0 %v34
    %71 = vmatprep.subr.mxu0 0.0
    %72 = vmatpush1.msra.mxu0 %v33
    %73 = vmatprep.subr.mxu0 0.0
    %74 = vmatpush2.msra.mxu0 0.0
    %75 = vmatprep.subr.mxu0 0.0
    %76 = vmatpush2.msra.mxu0 0.0
    %77 = vmatprep.subr.mxu0 0.0
    %78 = vmatpush2.msra.mxu0 0.0
    %79 = vmatprep.subr.mxu0 0.0
    %80 = vmatpush2.msra.mxu0 0.0
    %81 = vmatprep.subr.mxu0 0.0
    %82 = vmatpush2.msra.mxu0 0.0
    %83 = vmatprep.subr.mxu0 0.0
    %84 = vmatpush2.msra.mxu0 0.0
    %85 = vmatprep.subr.mxu0 0.0
    %86 = vmatpush2.msra.mxu0 0.0
    %87 = vmatprep.subr.mxu0 0.0
    %88 = vmatpush2.msra.mxu0 0.0
    %89 = vmatprep.subr.mxu0 0.0
    %90 = vmatpush2.msra.mxu0 0.0
    %91 = vmatprep.subr.mxu0 0.0
    %92 = vmatpush2.msra.mxu0 0.0
    %93 = vmatprep.subr.mxu0 0.0
    %94 = vmatpush2.msra.mxu0 0.0
    %95 = vmatprep.subr.mxu0 0.0
    %96 = vmatpush2.msra.mxu0 0.0
    %97 = vmatprep.subr.mxu0 0.0
    %98 = vmatpush2.msra.mxu0 0.0
    %99 = vmatprep.subr.mxu0 0.0
    %100 = vmatpush2.msra.mxu0 0.0
    %101 = vmatprep.subr.mxu0 0.0
    %102 = vmatpush2.msra.mxu0 0.0
    %103 = vmatprep.subr.mxu0 0.0
    %104 = vmatpush2.msra.mxu0 0.0
    %105 = vmatprep.mubr.f32.mxu0 0.0
    %106 = vmatmul.mubr.f32.gmra.mxu0 %v39
    %v107 = vpop.f32.mrf.mxu0
    %v108 = vadd.f32 0.0, %v107
    %v109 = vpop.f32.mrf.mxu0
    %110 = vdwg.mxu0
    %vm111 = vcmp.gt.f32.partialorder %v108, 0.0
    %v112 = vmul.f32 %v108, 0.01
    %v113 = vsel %vm111, %v108, %v112
    %v114 = vld [vmem:[%s2] sm:$0xff]
    %v115 = vld [vmem:[%s2 + $0x8] sm:$0xff]
    %v116 = vld [vmem:[%s2 + $0x10] sm:$0xff]
    %v117 = vld [vmem:[%s2 + $0x18] sm:$0xff]
    %v118 = vld [vmem:[%s2 + $0x20] sm:$0xff]
    %v119 = vld [vmem:[%s2 + $0x28] sm:$0xff]
    %v120 = vld [vmem:[%s2 + $0x30] sm:$0xff]
    %v121 = vld [vmem:[%s2 + $0x38] sm:$0xff]
    %v122 = vld [vmem:[%s2 + $0x40] sm:$0xff]
    %v123 = vld [vmem:[%s2 + $0x48] sm:$0xff]
    %v124 = vld [vmem:[%s2 + $0x50] sm:$0xff]
    %v125 = vld [vmem:[%s2 + $0x58] sm:$0xff]
    %v126 = vld [vmem:[%s2 + $0x60] sm:$0xff]
    %v127 = vld [vmem:[%s2 + $0x68] sm:$0xff]
    %v128 = vld [vmem:[%s2 + $0x70] sm:$0xff]
    %v129 = vld [vmem:[%s2 + $0x78] sm:$0xff]
    %130 = vmatprep.subr.mxu0 0.0
    %131 = vmatpush1.msra.mxu0 %v129
    %132 = vmatprep.subr.mxu0 0.0
    %133 = vmatpush1.msra.mxu0 %v128
    %134 = vmatprep.subr.mxu0 0.0
    %135 = vmatpush1.msra.mxu0 %v127
    %136 = vmatprep.subr.mxu0 0.0
    %137 = vmatpush1.msra.mxu0 %v126
    %138 = vmatprep.subr.mxu0 0.0
    %139 = vmatpush1.msra.mxu0 %v125
    %140 = vmatprep.subr.mxu0 0.0
    %141 = vmatpush1.msra.mxu0 %v124
    %142 = vmatprep.subr.mxu0 0.0
    %143 = vmatpush1.msra.mxu0 %v123
    %144 = vmatprep.subr.mxu0 0.0
    %145 = vmatpush1.msra.mxu0 %v122
    %146 = vmatprep.subr.mxu0 0.0
    %147 = vmatpush1.msra.mxu0 %v121
    %148 = vmatprep.subr.mxu0 0.0
    %149 = vmatpush1.msra.mxu0 %v120
    %150 = vmatprep.subr.mxu0 0.0
    %151 = vmatpush1.msra.mxu0 %v119
    %152 = vmatprep.subr.mxu0 0.0
    %153 = vmatpush1.msra.mxu0 %v118
    %154 = vmatprep.subr.mxu0 0.0
    %155 = vmatpush1.msra.mxu0 %v117
    %156 = vmatprep.subr.mxu0 0.0
    %157 = vmatpush1.msra.mxu0 %v116
    %158 = vmatprep.subr.mxu0 0.0
    %159 = vmatpush1.msra.mxu0 %v115
    %160 = vmatprep.subr.mxu0 0.0
    %161 = vmatpush1.msra.mxu0 %v114
    %162 = vmatprep.subr.mxu0 0.0
    %163 = vmatpush2.msra.mxu0 0.0
    %164 = vmatprep.subr.mxu0 0.0
    %165 = vmatpush2.msra.mxu0 0.0
    %166 = vmatprep.subr.mxu0 0.0
    %167 = vmatpush2.msra.mxu0 0.0
    %168 = vmatprep.subr.mxu0 0.0
    %169 = vmatpush2.msra.mxu0 0.0
    %170 = vmatprep.subr.mxu0 0.0
    %171 = vmatpush2.msra.mxu0 0.0
    %172 = vmatprep.subr.mxu0 0.0
    %173 = vmatpush2.msra.mxu0 0.0
    %174 = vmatprep.subr.mxu0 0.0
    %175 = vmatpush2.msra.mxu0 0.0
    %176 = vmatprep.subr.mxu0 0.0
    %177 = vmatpush2.msra.mxu0 0.0
    %178 = vmatprep.subr.mxu0 0.0
    %179 = vmatpush2.msra.mxu0 0.0
    %180 = vmatprep.subr.mxu0 0.0
    %181 = vmatpush2.msra.mxu0 0.0
    %182 = vmatprep.subr.mxu0 0.0
    %183 = vmatpush2.msra.mxu0 0.0
    %184 = vmatprep.subr.mxu0 0.0
    %185 = vmatpush2.msra.mxu0 0.0
    %186 = vmatprep.subr.mxu0 0.0
    %187 = vmatpush2.msra.mxu0 0.0
    %188 = vmatprep.subr.mxu0 0.0
    %189 = vmatpush2.msra.mxu0 0.0
    %190 = vmatprep.subr.mxu0 0.0
    %191 = vmatpush2.msra.mxu0 0.0
    %192 = vmatprep.subr.mxu0 0.0
    %193 = vmatpush2.msra.mxu0 0.0
    %194 = vmatprep.mubr.f32.mxu0 0.0
    %195 = vmatmul.mubr.f32.gmra.mxu0 %v113
    %v196 = vpop.f32.mrf.mxu0
    %v197 = vadd.f32 0.0, %v196
    %v198 = vpop.f32.mrf.mxu0
    %199 = vdwg.mxu0
    %vm200 = vcmp.gt.f32.partialorder %v197, 0.0
    %v201 = vmul.f32 %v197, 0.01
    %v202 = vsel %vm200, %v197, %v201
    %v203 = vld [vmem:[%s3] sm:$0xff]
    %v204 = vld [vmem:[%s3 + $0x8] sm:$0xff]
    %v205 = vld [vmem:[%s3 + $0x10] sm:$0xff]
    %v206 = vld [vmem:[%s3 + $0x18] sm:$0xff]
    %v207 = vld [vmem:[%s3 + $0x20] sm:$0xff]
    %v208 = vld [vmem:[%s3 + $0x28] sm:$0xff]
    %v209 = vld [vmem:[%s3 + $0x30] sm:$0xff]
    %v210 = vld [vmem:[%s3 + $0x38] sm:$0xff]
    %v211 = vld [vmem:[%s3 + $0x40] sm:$0xff]
    %v212 = vld [vmem:[%s3 + $0x48] sm:$0xff]
    %v213 = vld [vmem:[%s3 + $0x50] sm:$0xff]
    %v214 = vld [vmem:[%s3 + $0x58] sm:$0xff]
    %v215 = vld [vmem:[%s3 + $0x60] sm:$0xff]
    %v216 = vld [vmem:[%s3 + $0x68] sm:$0xff]
    %v217 = vld [vmem:[%s3 + $0x70] sm:$0xff]
    %v218 = vld [vmem:[%s3 + $0x78] sm:$0xff]
    %219 = vmatprep.subr.mxu0 0.0
    %220 = vmatpush1.msra.mxu0 %v218
    %221 = vmatprep.subr.mxu0 0.0
    %222 = vmatpush1.msra.mxu0 %v217
    %223 = vmatprep.subr.mxu0 0.0
    %224 = vmatpush1.msra.mxu0 %v216
    %225 = vmatprep.subr.mxu0 0.0
    %226 = vmatpush1.msra.mxu0 %v215
    %227 = vmatprep.subr.mxu0 0.0
    %228 = vmatpush1.msra.mxu0 %v214
    %229 = vmatprep.subr.mxu0 0.0
    %230 = vmatpush1.msra.mxu0 %v213
    %231 = vmatprep.subr.mxu0 0.0
    %232 = vmatpush1.msra.mxu0 %v212
    %233 = vmatprep.subr.mxu0 0.0
    %234 = vmatpush1.msra.mxu0 %v211
    %235 = vmatprep.subr.mxu0 0.0
    %236 = vmatpush1.msra.mxu0 %v210
    %237 = vmatprep.subr.mxu0 0.0
    %238 = vmatpush1.msra.mxu0 %v209
    %239 = vmatprep.subr.mxu0 0.0
    %240 = vmatpush1.msra.mxu0 %v208
    %241 = vmatprep.subr.mxu0 0.0
    %242 = vmatpush1.msra.mxu0 %v207
    %243 = vmatprep.subr.mxu0 0.0
    %244 = vmatpush1.msra.mxu0 %v206
    %245 = vmatprep.subr.mxu0 0.0
    %246 = vmatpush1.msra.mxu0 %v205
    %247 = vmatprep.subr.mxu0 0.0
    %248 = vmatpush1.msra.mxu0 %v204
    %249 = vmatprep.subr.mxu0 0.0
    %250 = vmatpush1.msra.mxu0 %v203
    %251 = vmatprep.subr.mxu0 0.0
    %252 = vmatpush2.msra.mxu0 0.0
    %253 = vmatprep.subr.mxu0 0.0
    %254 = vmatpush2.msra.mxu0 0.0
    %255 = vmatprep.subr.mxu0 0.0
    %256 = vmatpush2.msra.mxu0 0.0
    %257 = vmatprep.subr.mxu0 0.0
    %258 = vmatpush2.msra.mxu0 0.0
    %259 = vmatprep.subr.mxu0 0.0
    %260 = vmatpush2.msra.mxu0 0.0
    %261 = vmatprep.subr.mxu0 0.0
    %262 = vmatpush2.msra.mxu0 0.0
    %263 = vmatprep.subr.mxu0 0.0
    %264 = vmatpush2.msra.mxu0 0.0
    %265 = vmatprep.subr.mxu0 0.0
    %266 = vmatpush2.msra.mxu0 0.0
    %267 = vmatprep.subr.mxu0 0.0
    %268 = vmatpush2.msra.mxu0 0.0
    %269 = vmatprep.subr.mxu0 0.0
    %270 = vmatpush2.msra.mxu0 0.0
    %271 = vmatprep.subr.mxu0 0.0
    %272 = vmatpush2.msra.mxu0 0.0
    %273 = vmatprep.subr.mxu0 0.0
    %274 = vmatpush2.msra.mxu0 0.0
    %275 = vmatprep.subr.mxu0 0.0
    %276 = vmatpush2.msra.mxu0 0.0
    %277 = vmatprep.subr.mxu0 0.0
    %278 = vmatpush2.msra.mxu0 0.0
    %279 = vmatprep.subr.mxu0 0.0
    %280 = vmatpush2.msra.mxu0 0.0
    %281 = vmatprep.subr.mxu0 0.0
    %282 = vmatpush2.msra.mxu0 0.0
    %283 = vmatprep.mubr.f32.mxu0 0.0
    %284 = vmatmul.mubr.f32.gmra.mxu0 %v202
    %v285 = vpop.f32.mrf.mxu0
    %v286 = vadd.f32 0.0, %v285
    %v287 = vpop.f32.mrf.mxu0
    %288 = vdwg.mxu0
    %vm289 = vcmask 130048
    %290 = vst.msk [vmem:[#allocation5] sm:$0xff] %vm289, %v286
    // Predicated region
    $region22: #{_ann_forward.1} parent=1 // pred_check
      _
    $region23: #{_ann_forward.1} parent=1 // pred_check_branch
      %292 = sbr.rel (0) target = $region25
    $region24: #{_ann_forward.1} parent=1 // pred_region
      %s294 = ssub.s32 128, 128
      %295 = vsyncadd [#allocation4], %s294
      %s297 = sshll.u32 [#allocation5], 4
      %s298 = int_to_ptr.vmem [resolvable:$true] %s297
      %300 = dma.vmem_to_hbm [thread:$0]  %s298, 128, %s4, [#allocation4]
    $region25: #{_ann_forward.1} parent=1 // pred_fallthru
      _
    // Predicated region
    $region26: #{_ann_forward.1} parent=1 // pred_check
      _
    $region27: #{_ann_forward.1} parent=1 // pred_check_branch
      %302 = sbr.rel (0) target = $region29
    $region28: #{_ann_forward.1} parent=1 // pred_region
      %303 = dma.done [#allocation4], 128
    $region29: #{_ann_forward.1} parent=1 // pred_fallthru
      _
    %304 = vsyncpa [#allocation3], 1
    %305 = vsyncpa [#allocation4], 1

</llo_original>
